<compile_context>
chip_gen: v6e
topology: v6e:2x2x1
jax: 0.10.0
libtpu: 0.0.40
codegen_flags: <defaults>
</compile_context>

<pallas_src>
import functools
import math

import numpy as np
import jax
import jax.numpy as jnp
from jax.experimental import pallas as pl
from jax.experimental.pallas import tpu as pltpu


FC_PAD = 128  # pad Linear output channels to a full lane width (dense store)


# ----------------------------------------------------------------------------
# Fused Pallas kernel: entire Classification_only forward
# ----------------------------------------------------------------------------
def _cls_kernel(x_ref, k_ref, bnb_ref, wfc_ref, bfc_ref, o_ref):
    """x_ref:   (Nb, C, HW)   f32   activations, HW on the lane dim
       k_ref:   (2*HW, HW)    bf16  fused [avg; max] 7x7 conv matrices
                                    (BN scale folded; 1/C folded in avg half)
       bnb_ref: (1, HW)       f32   folded BatchNorm bias row
       wfc_ref: (C, FC_PAD)   f32   Linear weight^T, 1/HW folded, lane-padded
       bfc_ref: (1, FC_PAD)   f32   Linear bias, lane-padded
       o_ref:   (Nb, FC_PAD)  f32   sigmoid(fc(...)); valid cols [:num_classes]
    """
    x = x_ref[...]                                       # (Nb, C, HW)

    # SpatialAttention inputs: channel sum (== C * mean, 1/C folded into K)
    # and channel max (sublane reductions).
    ssum = jnp.sum(x, axis=1)                            # (Nb, HW)
    smax = jnp.max(x, axis=1)                            # (Nb, HW)
    am = jnp.concatenate([ssum, smax], axis=-1)          # (Nb, 2*HW)

    # 7x7 conv (padding=3, no bias) + folded eval-mode BN: one MXU matmul
    # against the fused bf16 matrix; operands cast to bf16 only at the dot.
    att = (jnp.dot(am.astype(jnp.bfloat16), k_ref[...],
                   preferred_element_type=jnp.float32)
           + bnb_ref[...])                               # (Nb, HW)
    att = jax.nn.sigmoid(att)

    # x * attention, then global average pool over HW (1/HW folded into wfc).
    # Re-read x from VMEM instead of keeping it live across the matmul.
    pooled = jnp.sum(x_ref[...] * att[:, None, :], axis=-1)   # (Nb, C)

    # Linear + sigmoid (output lanes padded to 128 for a dense store).
    logits = (jnp.dot(pooled, wfc_ref[...], preferred_element_type=jnp.float32)
              + bfc_ref[...])                            # (Nb, FC_PAD)
    o_ref[...] = jax.nn.sigmoid(logits).astype(o_ref.dtype)


def classification_forward(params, x_nchw, *, num_classes=6, batch_tile=64):
    N, C, H, W = x_nchw.shape
    HW = H * W
    x3 = x_nchw.reshape(N, C, HW)   # NCHW -> (N, C, HW): pure reshape, no transpose
    k, bnb, wfc, bfc = params["k"], params["bn_bias"], params["wfc"], params["bfc"]

    if N <= batch_tile:
        # Single invocation: no grid, no pipeline double-buffering.
        out = pl.pallas_call(
            _cls_kernel,
            out_shape=jax.ShapeDtypeStruct((N, FC_PAD), jnp.float32),
            in_specs=[
                pl.BlockSpec((N, C, HW), lambda: (0, 0, 0)),
                pl.BlockSpec((2 * HW, HW), lambda: (0, 0)),
                pl.BlockSpec((1, HW), lambda: (0, 0)),
                pl.BlockSpec((C, FC_PAD), lambda: (0, 0)),
                pl.BlockSpec((1, FC_PAD), lambda: (0, 0)),
            ],
            out_specs=pl.BlockSpec((N, FC_PAD), lambda: (0, 0)),
        )(x3, k, bnb, wfc, bfc)
        return out[:, :num_classes]

    # Batch-tiled grid: x / output blocked over N (double-buffered by Pallas),
    # weights stay VMEM-resident (constant index maps), batch axis 'parallel'
    # so megacore / v7x dual TensorCores split it.
    n_b = batch_tile
    n_pad = int(pl.cdiv(N, n_b)) * n_b
    if n_pad != N:
        x3 = jnp.pad(x3, ((0, n_pad - N), (0, 0), (0, 0)))
    out = pl.pallas_call(
        _cls_kernel,
        out_shape=jax.ShapeDtypeStruct((n_pad, FC_PAD), jnp.float32),
        grid=(n_pad // n_b,),
        in_specs=[
            pl.BlockSpec((n_b, C, HW), lambda i: (i, 0, 0)),
            pl.BlockSpec((2 * HW, HW), lambda i: (0, 0)),
            pl.BlockSpec((1, HW), lambda i: (0, 0)),
            pl.BlockSpec((C, FC_PAD), lambda i: (0, 0)),
            pl.BlockSpec((1, FC_PAD), lambda i: (0, 0)),
        ],
        out_specs=pl.BlockSpec((n_b, FC_PAD), lambda i: (i, 0)),
        compiler_params=pltpu.CompilerParams(
            dimension_semantics=("parallel",)),
    )(x3, k, bnb, wfc, bfc)
    return out[:N, :num_classes]


# ----------------------------------------------------------------------------
# Parameter construction (deterministic, PyTorch-style uniform init)
# ----------------------------------------------------------------------------
def _conv7x7_as_matrix(w_oihw, H, W):
    """w: (1, 2, 7, 7) conv weight -> K (2, H*W, H*W) with
       out_flat[p] = sum_{c,q} in_flat[c, q] * K[c, q, p]  (padding = 3)."""
    k = w_oihw.shape[-1]
    pad = k // 2
    K = np.zeros((2, H * W, H * W), np.float32)
    for c in range(2):
        for i in range(H):
            for j in range(W):
                p = i * W + j
                for a in range(k):
                    ii = i + a - pad
                    if ii < 0 or ii >= H:
                        continue
                    for b in range(k):
                        jj = j + b - pad
                        if jj < 0 or jj >= W:
                            continue
                        K[c, ii * W + jj, p] = w_oihw[0, c, a, b]
    return K


def init_params(key, *, in_ch=64, num_classes=6, H=16, W=16):
    k_sa, k_fw, k_fb = jax.random.split(key, 3)
    HW = H * W

    # SpatialAttention: Conv2d(2, 1, 7, padding=3, bias=False)
    bound = 1.0 / math.sqrt(2 * 7 * 7)
    w_sa = jax.random.uniform(k_sa, (1, 2, 7, 7), minval=-bound, maxval=bound,
                              dtype=jnp.float32)

    # BatchNorm2d(1), eval mode, fresh running stats (gamma=1, beta=0, mean=0, var=1).
    eps = 1e-5
    bn_scale = 1.0 / math.sqrt(1.0 + eps)
    bn_bias_val = 0.0

    # Fold BN scale into the conv matrices, fuse [avg; max] into one matrix,
    # fold 1/C into the avg half (kernel uses channel SUM), store in bf16.
    K = _conv7x7_as_matrix(np.asarray(w_sa), H, W) * bn_scale      # (2, HW, HW)
    Kf = np.concatenate([K[0] / float(in_ch), K[1]], axis=0)       # (2*HW, HW)
    k_bf16 = jnp.asarray(Kf, dtype=jnp.bfloat16)

    # fc: Linear(in_ch, num_classes); fold the 1/HW avg-pool factor into W.
    fb = 1.0 / math.sqrt(in_ch)
    w_fc = jax.random.uniform(k_fw, (num_classes, in_ch), minval=-fb, maxval=fb,
                              dtype=jnp.float32)
    b_fc = jax.random.uniform(k_fb, (num_classes,), minval=-fb, maxval=fb,
                              dtype=jnp.float32)
    wfc_pad = jnp.zeros((in_ch, FC_PAD), jnp.float32).at[:, :num_classes].set(
        w_fc.T / float(HW))
    bfc_pad = jnp.zeros((1, FC_PAD), jnp.float32).at[0, :num_classes].set(b_fc)

    params = {
        "k": k_bf16,
        "bn_bias": jnp.full((1, HW), bn_bias_val, jnp.float32),
        "wfc": wfc_pad,
        "bfc": bfc_pad,
    }
    raw = {"w_sa": w_sa, "w_fc": w_fc, "b_fc": b_fc}
    return params, raw


# ----------------------------------------------------------------------------
# Pure-JAX reference (matches the PyTorch module, eval-mode BN)
# ----------------------------------------------------------------------------
def reference_forward(raw, x, *, num_classes=6):
    avg = jnp.mean(x, axis=1, keepdims=True)
    mx = jnp.max(x, axis=1, keepdims=True)
    att_in = jnp.concatenate([avg, mx], axis=1)                    # (N, 2, H, W)
    conv = jax.lax.conv_general_dilated(
        att_in, raw["w_sa"], window_strides=(1, 1), padding=((3, 3), (3, 3)),
        dimension_numbers=("NCHW", "OIHW", "NCHW"),
        precision=jax.lax.Precision.HIGHEST)
    att = jax.nn.sigmoid(conv * (1.0 / math.sqrt(1.0 + 1e-5)))     # fresh BN, eval mode
    pooled = jnp.mean(x * att, axis=(2, 3))                        # (N, C)
    logits = jnp.dot(pooled, raw["w_fc"].T,
                     precision=jax.lax.Precision.HIGHEST) + raw["b_fc"]
    return jax.nn.sigmoid(logits)


if __name__ == "__main__":
    key = jax.random.PRNGKey(0)
    pkey, xkey, xkey2 = jax.random.split(key, 3)

    N, C, H, W = 2, 64, 16, 16        # baseline=True => Linear(64, num_classes) => C = 64
    num_classes = 6
    params, raw = init_params(pkey, in_ch=C, num_classes=num_classes, H=H, W=W)
    fwd = jax.jit(functools.partial(classification_forward, num_classes=num_classes))

    # --- small-batch path: grid-less single invocation --------------------
    x = jax.random.normal(xkey, (N, C, H, W), dtype=jnp.float32)
    out = fwd(params, x)
    jax.block_until_ready(out)
    ref = reference_forward(raw, x, num_classes=num_classes)
    assert out.shape == (N, num_classes)
    assert bool(jnp.all(jnp.isfinite(out)))
    assert bool(jnp.all((out >= 0.0) & (out <= 1.0)))
    assert bool(jnp.allclose(out, ref, rtol=2e-3, atol=2e-3)), (
        f"max abs err {float(jnp.max(jnp.abs(out - ref)))}")

    # --- batch-tiled grid path: weights VMEM-resident, batch 'parallel' ---
    N2 = 96                            # not a multiple of the 64-row tile -> exercises padding
    x2 = jax.random.normal(xkey2, (N2, C, H, W), dtype=jnp.float32)
    out2 = fwd(params, x2)
    jax.block_until_ready(out2)
    ref2 = reference_forward(raw, x2, num_classes=num_classes)
    assert out2.shape == (N2, num_classes)
    assert bool(jnp.allclose(out2, ref2, rtol=2e-3, atol=2e-3)), (
        f"max abs err {float(jnp.max(jnp.abs(out2 - ref2)))}")

    print("KERNEL_OK")
</pallas_src>

<mosaic_0001>
module attributes {stable_mosaic.version = 11 : i64} {
  func.func @_cls_kernel(%arg0: memref<2x64x256xf32, #tpu.memory_space<vmem>>, %arg1: memref<512x256xbf16, #tpu.memory_space<vmem>>, %arg2: memref<1x256xf32, #tpu.memory_space<vmem>>, %arg3: memref<64x128xf32, #tpu.memory_space<vmem>>, %arg4: memref<1x128xf32, #tpu.memory_space<vmem>>, %arg5: memref<2x128xf32, #tpu.memory_space<vmem>>) attributes {dimension_semantics = [], scalar_prefetch = 0 : i64, scratch_operands = 0 : i64, tpu.core_type = #tpu.core_type<tc>} {
    %c0 = arith.constant 0 : index
    %c0_0 = arith.constant 0 : index
    %c0_1 = arith.constant 0 : index
    %0 = vector.load %arg0[%c0, %c0_0, %c0_1] : memref<2x64x256xf32, #tpu.memory_space<vmem>>, vector<2x64x256xf32>
    %cst = arith.constant dense<0.000000e+00> : vector<2x256xf32>
    %1 = vector.multi_reduction <add>, %0, %cst [1] : vector<2x64x256xf32> to vector<2x256xf32>
    %cst_2 = arith.constant dense<0xFF800000> : vector<2x256xf32>
    %2 = vector.multi_reduction <maximumf>, %0, %cst_2 [1] : vector<2x64x256xf32> to vector<2x256xf32>
    %3 = tpu.concatenate %1, %2 in 1 : vector<2x256xf32>, vector<2x256xf32> -> vector<2x512xf32>
    %4 = arith.truncf %3 : vector<2x512xf32> to vector<2x512xbf16>
    %c0_3 = arith.constant 0 : index
    %c0_4 = arith.constant 0 : index
    %5 = vector.load %arg1[%c0_3, %c0_4] : memref<512x256xbf16, #tpu.memory_space<vmem>>, vector<512x256xbf16>
    %cst_5 = arith.constant dense<0.000000e+00> : vector<2x256xf32>
    %6 = tpu.matmul %4, %5, %cst_5 {dimension_numbers = #tpu.dot_dimension_numbers<[1], [0], [0], [1], [0, 0, 1, 1], [], []>} : vector<2x512xbf16>, vector<512x256xbf16>, vector<2x256xf32> -> vector<2x256xf32>
    %c0_6 = arith.constant 0 : index
    %c0_7 = arith.constant 0 : index
    %7 = vector.load %arg2[%c0_6, %c0_7] : memref<1x256xf32, #tpu.memory_space<vmem>>, vector<1x256xf32>
    %8 = vector.broadcast %7 : vector<1x256xf32> to vector<2x256xf32>
    %9 = arith.addf %6, %8 : vector<2x256xf32>
    %10 = arith.negf %9 : vector<2x256xf32>
    %11 = math.exp %10 : vector<2x256xf32>
    %cst_8 = arith.constant 1.000000e+00 : f32
    %12 = vector.broadcast %cst_8 : f32 to vector<2x256xf32>
    %13 = arith.addf %12, %11 : vector<2x256xf32>
    %14 = arith.divf %12, %13 : vector<2x256xf32>
    %c0_9 = arith.constant 0 : index
    %c0_10 = arith.constant 0 : index
    %c0_11 = arith.constant 0 : index
    %15 = vector.load %arg0[%c0_9, %c0_10, %c0_11] : memref<2x64x256xf32, #tpu.memory_space<vmem>>, vector<2x64x256xf32>
    %16 = vector.shape_cast %14 : vector<2x256xf32> to vector<2x1x256xf32>
    %17 = vector.broadcast %16 : vector<2x1x256xf32> to vector<2x64x256xf32>
    %18 = arith.mulf %15, %17 : vector<2x64x256xf32>
    %cst_12 = arith.constant dense<0.000000e+00> : vector<2x64xf32>
    %19 = vector.multi_reduction <add>, %18, %cst_12 [2] : vector<2x64x256xf32> to vector<2x64xf32>
    %c0_13 = arith.constant 0 : index
    %c0_14 = arith.constant 0 : index
    %20 = vector.load %arg3[%c0_13, %c0_14] : memref<64x128xf32, #tpu.memory_space<vmem>>, vector<64x128xf32>
    %cst_15 = arith.constant dense<0.000000e+00> : vector<2x128xf32>
    %21 = tpu.matmul %19, %20, %cst_15 {dimension_numbers = #tpu.dot_dimension_numbers<[1], [0], [0], [1], [0, 0, 1, 1], [], []>} : vector<2x64xf32>, vector<64x128xf32>, vector<2x128xf32> -> vector<2x128xf32>
    %c0_16 = arith.constant 0 : index
    %c0_17 = arith.constant 0 : index
    %22 = vector.load %arg4[%c0_16, %c0_17] : memref<1x128xf32, #tpu.memory_space<vmem>>, vector<1x128xf32>
    %23 = vector.broadcast %22 : vector<1x128xf32> to vector<2x128xf32>
    %24 = arith.addf %21, %23 : vector<2x128xf32>
    %25 = arith.negf %24 : vector<2x128xf32>
    %26 = math.exp %25 : vector<2x128xf32>
    %cst_18 = arith.constant 1.000000e+00 : f32
    %27 = vector.broadcast %cst_18 : f32 to vector<2x128xf32>
    %28 = arith.addf %27, %26 : vector<2x128xf32>
    %29 = arith.divf %27, %28 : vector<2x128xf32>
    %c0_19 = arith.constant 0 : index
    %c0_20 = arith.constant 0 : index
    %30 = vector.load %arg5[%c0_19, %c0_20] : memref<2x128xf32, #tpu.memory_space<vmem>>, vector<2x128xf32>
    tpu.vector_store %arg5[%c0_19, %c0_20], %29 {strides = array<i32>} : memref<2x128xf32, #tpu.memory_space<vmem>>, vector<2x128xf32>,
    return
  }
}

</mosaic_0001>

<llo_original>
// kernel: classification_forward.1
$region0: #{classification_forward.1}
  #allocation0 [shape = 'u32[]', space=smem, size = 0x4, offset = 0x4, fixed_abs, tag = 'smem constant byte address 0x4 - core index']
  #allocation1 [shape = 'u32[144,128]{1,0:T(1,128)}', space=vmem, size = 0x12000, scoped, tag = 'internal scratch']
  %s0 = inlined_call_operand.vmem [shape: f32[2,64,256], index: 0, kind: input, shape index: {}]
  %s1 = inlined_call_operand.vmem [shape: bf16[512,256], index: 1, kind: input, shape index: {}]
  %s2 = inlined_call_operand.vmem [shape: f32[1,256], index: 2, kind: input, shape index: {}]
  %s3 = inlined_call_operand.vmem [shape: f32[64,128], index: 3, kind: input, shape index: {}]
  %s4 = inlined_call_operand.vmem [shape: f32[1,128], index: 4, kind: input, shape index: {}]
  %s5 = inlined_call_operand.hbm [shape: f32[2,128], index: 5, kind: output, shape index: {}]
  %s6 = sld [smem:[#allocation0]]
  $region30: #{classification_forward.1} parent=0
    _
  %s8 = ssub.s32 1, %s6
  %s9 = scalar_select 0, %s8, %s6
  $region1: #{classification_forward.1} parent=0
    #allocation2 [shape = 'u8[1024]{0}', space=vmem, size = 0x400, scoped, tag = 'output window, operand 0, single buffered']
    #allocation3 [shape = 's32[1]{0}', space=sflag, size = 0x4, scoped, tag = 'scoped memory for classification_forward.1']
    %10 = vsyncpa [#allocation3], 0
    // Predicated region
    $region2: #{classification_forward.1} parent=1 // pred_check
      _
    $region3: #{classification_forward.1} parent=1 // pred_check_branch
      %12 = sbr.rel (0) target = $region5
    $region4: #{classification_forward.1} parent=1 // pred_region
      _
    $region5: #{classification_forward.1} parent=1 // pred_fallthru
      _
    // Predicated region
    $region6: #{classification_forward.1} parent=1 // pred_check
      _
    $region7: #{classification_forward.1} parent=1 // pred_check_branch
      %14 = sbr.rel (0) target = $region9
    $region8: #{classification_forward.1} parent=1 // pred_region
      _
    $region9: #{classification_forward.1} parent=1 // pred_fallthru
      _
    // Predicated region
    $region10: #{classification_forward.1} parent=1 // pred_check
      _
    $region11: #{classification_forward.1} parent=1 // pred_check_branch
      %16 = sbr.rel (0) target = $region13
    $region12: #{classification_forward.1} parent=1 // pred_region
      _
    $region13: #{classification_forward.1} parent=1 // pred_fallthru
      _
    // Predicated region
    $region14: #{classification_forward.1} parent=1 // pred_check
      _
    $region15: #{classification_forward.1} parent=1 // pred_check_branch
      %18 = sbr.rel (0) target = $region17
    $region16: #{classification_forward.1} parent=1 // pred_region
      _
    $region17: #{classification_forward.1} parent=1 // pred_fallthru
      _
    // Predicated region
    $region18: #{classification_forward.1} parent=1 // pred_check
      _
    $region19: #{classification_forward.1} parent=1 // pred_check_branch
      %20 = sbr.rel (0) target = $region21
    $region20: #{classification_forward.1} parent=1 // pred_region
      _
    $region21: #{classification_forward.1} parent=1 // pred_fallthru
      _
    %v21 = vld [vmem:[%s0] sm:$0xff]
    %v22 = vld [vmem:[%s0 + $0x8] sm:$0xff]
    %v23 = vld [vmem:[%s0 + $0x10] sm:$0xff]
    %v24 = vld [vmem:[%s0 + $0x18] sm:$0xff]
    %v25 = vld [vmem:[%s0 + $0x20] sm:$0xff]
    %v26 = vld [vmem:[%s0 + $0x28] sm:$0xff]
    %v27 = vld [vmem:[%s0 + $0x30] sm:$0xff]
    %v28 = vld [vmem:[%s0 + $0x38] sm:$0xff]
    %v29 = vld [vmem:[%s0 + $0x40] sm:$0xff]
    %v30 = vld [vmem:[%s0 + $0x48] sm:$0xff]
    %v31 = vld [vmem:[%s0 + $0x50] sm:$0xff]
    %v32 = vld [vmem:[%s0 + $0x58] sm:$0xff]
    %v33 = vld [vmem:[%s0 + $0x60] sm:$0xff]
    %v34 = vld [vmem:[%s0 + $0x68] sm:$0xff]
    %v35 = vld [vmem:[%s0 + $0x70] sm:$0xff]
    %v36 = vld [vmem:[%s0 + $0x78] sm:$0xff]
    %v37 = vld [vmem:[%s0 + $0x80] sm:$0xff]
    %v38 = vld [vmem:[%s0 + $0x88] sm:$0xff]
    %v39 = vld [vmem:[%s0 + $0x90] sm:$0xff]
    %v40 = vld [vmem:[%s0 + $0x98] sm:$0xff]
    %v41 = vld [vmem:[%s0 + $0xa0] sm:$0xff]
    %v42 = vld [vmem:[%s0 + $0xa8] sm:$0xff]
    %v43 = vld [vmem:[%s0 + $0xb0] sm:$0xff]
    %v44 = vld [vmem:[%s0 + $0xb8] sm:$0xff]
    %v45 = vld [vmem:[%s0 + $0xc0] sm:$0xff]
    %v46 = vld [vmem:[%s0 + $0xc8] sm:$0xff]
    %v47 = vld [vmem:[%s0 + $0xd0] sm:$0xff]
    %v48 = vld [vmem:[%s0 + $0xd8] sm:$0xff]
    %v49 = vld [vmem:[%s0 + $0xe0] sm:$0xff]
    %v50 = vld [vmem:[%s0 + $0xe8] sm:$0xff]
    %v51 = vld [vmem:[%s0 + $0xf0] sm:$0xff]
    %v52 = vld [vmem:[%s0 + $0xf8] sm:$0xff]
    %v53 = vadd.f32 %v21, %v23
    %v54 = vadd.f32 %v53, %v25
    %v55 = vadd.f32 %v54, %v27
    %v56 = vadd.f32 %v55, %v29
    %v57 = vadd.f32 %v56, %v31
    %v58 = vadd.f32 %v57, %v33
    %v59 = vadd.f32 %v58, %v35
    %v60 = vrot.slane %v59, 4
    %v61 = vadd.f32 %v59, %v60
    %v62 = vrot.slane %v61, 2
    %v63 = vadd.f32 %v61, %v62
    %v64 = vrot.slane %v63, 1
    %v65 = vadd.f32 %v63, %v64
    %v66 = vadd.f32 %v22, %v24
    %v67 = vadd.f32 %v66, %v26
    %v68 = vadd.f32 %v67, %v28
    %v69 = vadd.f32 %v68, %v30
    %v70 = vadd.f32 %v69, %v32
    %v71 = vadd.f32 %v70, %v34
    %v72 = vadd.f32 %v71, %v36
    %v73 = vrot.slane %v72, 4
    %v74 = vadd.f32 %v72, %v73
    %v75 = vrot.slane %v74, 2
    %v76 = vadd.f32 %v74, %v75
    %v77 = vrot.slane %v76, 1
    %v78 = vadd.f32 %v76, %v77
    %v79 = vadd.f32 %v37, %v39
    %v80 = vadd.f32 %v79, %v41
    %v81 = vadd.f32 %v80, %v43
    %v82 = vadd.f32 %v81, %v45
    %v83 = vadd.f32 %v82, %v47
    %v84 = vadd.f32 %v83, %v49
    %v85 = vadd.f32 %v84, %v51
    %v86 = vrot.slane %v85, 4
    %v87 = vadd.f32 %v85, %v86
    %v88 = vrot.slane %v87, 2
    %v89 = vadd.f32 %v87, %v88
    %v90 = vrot.slane %v89, 1
    %v91 = vadd.f32 %v89, %v90
    %v92 = vadd.f32 %v38, %v40
    %v93 = vadd.f32 %v92, %v42
    %v94 = vadd.f32 %v93, %v44
    %v95 = vadd.f32 %v94, %v46
    %v96 = vadd.f32 %v95, %v48
    %v97 = vadd.f32 %v96, %v50
    %v98 = vadd.f32 %v97, %v52
    %v99 = vrot.slane %v98, 4
    %v100 = vadd.f32 %v98, %v99
    %v101 = vrot.slane %v100, 2
    %v102 = vadd.f32 %v100, %v101
    %v103 = vrot.slane %v102, 1
    %v104 = vadd.f32 %v102, %v103
    %v105 = vmax.f32 %v21, %v23
    %v106 = vmax.f32 %v105, %v25
    %v107 = vmax.f32 %v106, %v27
    %v108 = vmax.f32 %v107, %v29
    %v109 = vmax.f32 %v108, %v31
    %v110 = vmax.f32 %v109, %v33
    %v111 = vmax.f32 %v110, %v35
    %v112 = vrot.slane %v111, 4
    %v113 = vmax.f32 %v111, %v112
    %v114 = vrot.slane %v113, 2
    %v115 = vmax.f32 %v113, %v114
    %v116 = vrot.slane %v115, 1
    %v117 = vmax.f32 %v115, %v116
    %v118 = vmax.f32 %v22, %v24
    %v119 = vmax.f32 %v118, %v26
    %v120 = vmax.f32 %v119, %v28
    %v121 = vmax.f32 %v120, %v30
    %v122 = vmax.f32 %v121, %v32
    %v123 = vmax.f32 %v122, %v34
    %v124 = vmax.f32 %v123, %v36
    %v125 = vrot.slane %v124, 4
    %v126 = vmax.f32 %v124, %v125
    %v127 = vrot.slane %v126, 2
    %v128 = vmax.f32 %v126, %v127
    %v129 = vrot.slane %v128, 1
    %v130 = vmax.f32 %v128, %v129
    %v131 = vmax.f32 %v37, %v39
    %v132 = vmax.f32 %v131, %v41
    %v133 = vmax.f32 %v132, %v43
    %v134 = vmax.f32 %v133, %v45
    %v135 = vmax.f32 %v134, %v47
    %v136 = vmax.f32 %v135, %v49
    %v137 = vmax.f32 %v136, %v51
    %v138 = vrot.slane %v137, 4
    %v139 = vmax.f32 %v137, %v138
    %v140 = vrot.slane %v139, 2
    %v141 = vmax.f32 %v139, %v140
    %v142 = vrot.slane %v141, 1
    %v143 = vmax.f32 %v141, %v142
    %v144 = vmax.f32 %v38, %v40
    %v145 = vmax.f32 %v144, %v42
    %v146 = vmax.f32 %v145, %v44
    %v147 = vmax.f32 %v146, %v46
    %v148 = vmax.f32 %v147, %v48
    %v149 = vmax.f32 %v148, %v50
    %v150 = vmax.f32 %v149, %v52
    %v151 = vrot.slane %v150, 4
    %v152 = vmax.f32 %v150, %v151
    %v153 = vrot.slane %v152, 2
    %v154 = vmax.f32 %v152, %v153
    %v155 = vrot.slane %v154, 1
    %v156 = vmax.f32 %v154, %v155
    %vm161 = vcmask 1041409
    %v162 = vsel %vm161, %v91, %v65
    %v163 = vsel %vm161, %v104, %v78
    %v170 = vsel %vm161, %v143, %v117
    %v171 = vsel %vm161, %v156, %v130
    %v174 = vpack.c.bf16 %v162, %v162
    %v175 = vpack.c.bf16 %v163, %v163
    %v176 = vpack.c.bf16 %v170, %v170
    %v177 = vpack.c.bf16 %v171, %v171
    %v178 = vld [vmem:[%s1] sm:$0xff]
    %v179 = vld [vmem:[%s1 + $0x8] sm:$0xff]
    %v180 = vld [vmem:[%s1 + $0x10] sm:$0xff]
    %v181 = vld [vmem:[%s1 + $0x18] sm:$0xff]
    %v182 = vld [vmem:[%s1 + $0x20] sm:$0xff]
    %v183 = vld [vmem:[%s1 + $0x28] sm:$0xff]
    %v184 = vld [vmem:[%s1 + $0x30] sm:$0xff]
    %v185 = vld [vmem:[%s1 + $0x38] sm:$0xff]
    %v186 = vld [vmem:[%s1 + $0x40] sm:$0xff]
    %v187 = vld [vmem:[%s1 + $0x48] sm:$0xff]
    %v188 = vld [vmem:[%s1 + $0x50] sm:$0xff]
    %v189 = vld [vmem:[%s1 + $0x58] sm:$0xff]
    %v190 = vld [vmem:[%s1 + $0x60] sm:$0xff]
    %v191 = vld [vmem:[%s1 + $0x68] sm:$0xff]
    %v192 = vld [vmem:[%s1 + $0x70] sm:$0xff]
    %v193 = vld [vmem:[%s1 + $0x78] sm:$0xff]
    %v194 = vld [vmem:[%s1 + $0x80] sm:$0xff]
    %v195 = vld [vmem:[%s1 + $0x88] sm:$0xff]
    %v196 = vld [vmem:[%s1 + $0x90] sm:$0xff]
    %v197 = vld [vmem:[%s1 + $0x98] sm:$0xff]
    %v198 = vld [vmem:[%s1 + $0xa0] sm:$0xff]
    %v199 = vld [vmem:[%s1 + $0xa8] sm:$0xff]
    %v200 = vld [vmem:[%s1 + $0xb0] sm:$0xff]
    %v201 = vld [vmem:[%s1 + $0xb8] sm:$0xff]
    %v202 = vld [vmem:[%s1 + $0xc0] sm:$0xff]
    %v203 = vld [vmem:[%s1 + $0xc8] sm:$0xff]
    %v204 = vld [vmem:[%s1 + $0xd0] sm:$0xff]
    %v205 = vld [vmem:[%s1 + $0xd8] sm:$0xff]
    %v206 = vld [vmem:[%s1 + $0xe0] sm:$0xff]
    %v207 = vld [vmem:[%s1 + $0xe8] sm:$0xff]
    %v208 = vld [vmem:[%s1 + $0xf0] sm:$0xff]
    %v209 = vld [vmem:[%s1 + $0xf8] sm:$0xff]
    %v210 = vld [vmem:[%s1 + $0x100] sm:$0xff]
    %v211 = vld [vmem:[%s1 + $0x108] sm:$0xff]
    %v212 = vld [vmem:[%s1 + $0x110] sm:$0xff]
    %v213 = vld [vmem:[%s1 + $0x118] sm:$0xff]
    %v214 = vld [vmem:[%s1 + $0x120] sm:$0xff]
    %v215 = vld [vmem:[%s1 + $0x128] sm:$0xff]
    %v216 = vld [vmem:[%s1 + $0x130] sm:$0xff]
    %v217 = vld [vmem:[%s1 + $0x138] sm:$0xff]
    %v218 = vld [vmem:[%s1 + $0x140] sm:$0xff]
    %v219 = vld [vmem:[%s1 + $0x148] sm:$0xff]
    %v220 = vld [vmem:[%s1 + $0x150] sm:$0xff]
    %v221 = vld [vmem:[%s1 + $0x158] sm:$0xff]
    %v222 = vld [vmem:[%s1 + $0x160] sm:$0xff]
    %v223 = vld [vmem:[%s1 + $0x168] sm:$0xff]
    %v224 = vld [vmem:[%s1 + $0x170] sm:$0xff]
    %v225 = vld [vmem:[%s1 + $0x178] sm:$0xff]
    %v226 = vld [vmem:[%s1 + $0x180] sm:$0xff]
    %v227 = vld [vmem:[%s1 + $0x188] sm:$0xff]
    %v228 = vld [vmem:[%s1 + $0x190] sm:$0xff]
    %v229 = vld [vmem:[%s1 + $0x198] sm:$0xff]
    %v230 = vld [vmem:[%s1 + $0x1a0] sm:$0xff]
    %v231 = vld [vmem:[%s1 + $0x1a8] sm:$0xff]
    %v232 = vld [vmem:[%s1 + $0x1b0] sm:$0xff]
    %v233 = vld [vmem:[%s1 + $0x1b8] sm:$0xff]
    %v234 = vld [vmem:[%s1 + $0x1c0] sm:$0xff]
    %v235 = vld [vmem:[%s1 + $0x1c8] sm:$0xff]
    %v236 = vld [vmem:[%s1 + $0x1d0] sm:$0xff]
    %v237 = vld [vmem:[%s1 + $0x1d8] sm:$0xff]
    %v238 = vld [vmem:[%s1 + $0x1e0] sm:$0xff]
    %v239 = vld [vmem:[%s1 + $0x1e8] sm:$0xff]
    %v240 = vld [vmem:[%s1 + $0x1f0] sm:$0xff]
    %v241 = vld [vmem:[%s1 + $0x1f8] sm:$0xff]
    %v242 = vld [vmem:[%s2] sm:$0x3]
    %v244 = vlaneseq
    %v245 = vshrl.u32 %v244, 7
    %v246 = vsub.s32 0, %v245
    %v247 = vrot.slane %v242, %v246
    %v248 = vlaneseq
    %v249 = vshrl.u32 %v248, 7
    %v250 = vsub.s32 1, %v249
    %v251 = vrot.slane %v242, %v250
    %v318 = vunpack.c.l.b16 %v178
    %v319 = vunpack.c.h.b16 %v178
    %v320 = vunpack.c.l.b16 %v179
    %v321 = vunpack.c.h.b16 %v179
    %v322 = vunpack.c.l.b16 %v180
    %v323 = vunpack.c.h.b16 %v180
    %v324 = vunpack.c.l.b16 %v181
    %v325 = vunpack.c.h.b16 %v181
    %v326 = vunpack.c.l.b16 %v182
    %v327 = vunpack.c.h.b16 %v182
    %v328 = vunpack.c.l.b16 %v183
    %v329 = vunpack.c.h.b16 %v183
    %v330 = vunpack.c.l.b16 %v184
    %v331 = vunpack.c.h.b16 %v184
    %v332 = vunpack.c.l.b16 %v185
    %v333 = vunpack.c.h.b16 %v185
    %v334 = vunpack.c.l.b16 %v186
    %v335 = vunpack.c.h.b16 %v186
    %v336 = vunpack.c.l.b16 %v187
    %v337 = vunpack.c.h.b16 %v187
    %v338 = vunpack.c.l.b16 %v188
    %v339 = vunpack.c.h.b16 %v188
    %v340 = vunpack.c.l.b16 %v189
    %v341 = vunpack.c.h.b16 %v189
    %v342 = vunpack.c.l.b16 %v190
    %v343 = vunpack.c.h.b16 %v190
    %v344 = vunpack.c.l.b16 %v191
    %v345 = vunpack.c.h.b16 %v191
    %v346 = vunpack.c.l.b16 %v192
    %v347 = vunpack.c.h.b16 %v192
    %v348 = vunpack.c.l.b16 %v193
    %v349 = vunpack.c.h.b16 %v193
    %v350 = vunpack.c.l.b16 %v194
    %v351 = vunpack.c.h.b16 %v194
    %v352 = vunpack.c.l.b16 %v195
    %v353 = vunpack.c.h.b16 %v195
    %v354 = vunpack.c.l.b16 %v196
    %v355 = vunpack.c.h.b16 %v196
    %v356 = vunpack.c.l.b16 %v197
    %v357 = vunpack.c.h.b16 %v197
    %v358 = vunpack.c.l.b16 %v198
    %v359 = vunpack.c.h.b16 %v198
    %v360 = vunpack.c.l.b16 %v199
    %v361 = vunpack.c.h.b16 %v199
    %v362 = vunpack.c.l.b16 %v200
    %v363 = vunpack.c.h.b16 %v200
    %v364 = vunpack.c.l.b16 %v201
    %v365 = vunpack.c.h.b16 %v201
    %v366 = vunpack.c.l.b16 %v202
    %v367 = vunpack.c.h.b16 %v202
    %v368 = vunpack.c.l.b16 %v203
    %v369 = vunpack.c.h.b16 %v203
    %v370 = vunpack.c.l.b16 %v204
    %v371 = vunpack.c.h.b16 %v204
    %v372 = vunpack.c.l.b16 %v205
    %v373 = vunpack.c.h.b16 %v205
    %v374 = vunpack.c.l.b16 %v206
    %v375 = vunpack.c.h.b16 %v206
    %v376 = vunpack.c.l.b16 %v207
    %v377 = vunpack.c.h.b16 %v207
    %v378 = vunpack.c.l.b16 %v208
    %v379 = vunpack.c.h.b16 %v208
    %v380 = vunpack.c.l.b16 %v209
    %v381 = vunpack.c.h.b16 %v209
    %v382 = vunpack.c.l.b16 %v210
    %v383 = vunpack.c.h.b16 %v210
    %v384 = vunpack.c.l.b16 %v211
    %v385 = vunpack.c.h.b16 %v211
    %v386 = vunpack.c.l.b16 %v212
    %v387 = vunpack.c.h.b16 %v212
    %v388 = vunpack.c.l.b16 %v213
    %v389 = vunpack.c.h.b16 %v213
    %v390 = vunpack.c.l.b16 %v214
    %v391 = vunpack.c.h.b16 %v214
    %v392 = vunpack.c.l.b16 %v215
    %v393 = vunpack.c.h.b16 %v215
    %v394 = vunpack.c.l.b16 %v216
    %v395 = vunpack.c.h.b16 %v216
    %v396 = vunpack.c.l.b16 %v217
    %v397 = vunpack.c.h.b16 %v217
    %v398 = vunpack.c.l.b16 %v218
    %v399 = vunpack.c.h.b16 %v218
    %v400 = vunpack.c.l.b16 %v219
    %v401 = vunpack.c.h.b16 %v219
    %v402 = vunpack.c.l.b16 %v220
    %v403 = vunpack.c.h.b16 %v220
    %v404 = vunpack.c.l.b16 %v221
    %v405 = vunpack.c.h.b16 %v221
    %v406 = vunpack.c.l.b16 %v222
    %v407 = vunpack.c.h.b16 %v222
    %v408 = vunpack.c.l.b16 %v223
    %v409 = vunpack.c.h.b16 %v223
    %v410 = vunpack.c.l.b16 %v224
    %v411 = vunpack.c.h.b16 %v224
    %v412 = vunpack.c.l.b16 %v225
    %v413 = vunpack.c.h.b16 %v225
    %v414 = vunpack.c.l.b16 %v226
    %v415 = vunpack.c.h.b16 %v226
    %v416 = vunpack.c.l.b16 %v227
    %v417 = vunpack.c.h.b16 %v227
    %v418 = vunpack.c.l.b16 %v228
    %v419 = vunpack.c.h.b16 %v228
    %v420 = vunpack.c.l.b16 %v229
    %v421 = vunpack.c.h.b16 %v229
    %v422 = vunpack.c.l.b16 %v230
    %v423 = vunpack.c.h.b16 %v230
    %v424 = vunpack.c.l.b16 %v231
    %v425 = vunpack.c.h.b16 %v231
    %v426 = vunpack.c.l.b16 %v232
    %v427 = vunpack.c.h.b16 %v232
    %v428 = vunpack.c.l.b16 %v233
    %v429 = vunpack.c.h.b16 %v233
    %v430 = vunpack.c.l.b16 %v234
    %v431 = vunpack.c.h.b16 %v234
    %v432 = vunpack.c.l.b16 %v235
    %v433 = vunpack.c.h.b16 %v235
    %v434 = vunpack.c.l.b16 %v236
    %v435 = vunpack.c.h.b16 %v236
    %v436 = vunpack.c.l.b16 %v237
    %v437 = vunpack.c.h.b16 %v237
    %v438 = vunpack.c.l.b16 %v238
    %v439 = vunpack.c.h.b16 %v238
    %v440 = vunpack.c.l.b16 %v239
    %v441 = vunpack.c.h.b16 %v239
    %v442 = vunpack.c.l.b16 %v240
    %v443 = vunpack.c.h.b16 %v240
    %v444 = vunpack.c.l.b16 %v241
    %v445 = vunpack.c.h.b16 %v241
    %v446 = vpack.c.b16 %v320, %v318
    %v447 = vpack.c.b16 %v321, %v319
    %v448 = vpack.c.b16 %v324, %v322
    %v449 = vpack.c.b16 %v325, %v323
    %v450 = vpack.c.b16 %v328, %v326
    %v451 = vpack.c.b16 %v329, %v327
    %v452 = vpack.c.b16 %v332, %v330
    %v453 = vpack.c.b16 %v333, %v331
    %v454 = vpack.c.b16 %v336, %v334
    %v455 = vpack.c.b16 %v337, %v335
    %v456 = vpack.c.b16 %v340, %v338
    %v457 = vpack.c.b16 %v341, %v339
    %v458 = vpack.c.b16 %v344, %v342
    %v459 = vpack.c.b16 %v345, %v343
    %v460 = vpack.c.b16 %v348, %v346
    %v461 = vpack.c.b16 %v349, %v347
    %v462 = vpack.c.b16 %v352, %v350
    %v463 = vpack.c.b16 %v353, %v351
    %v464 = vpack.c.b16 %v356, %v354
    %v465 = vpack.c.b16 %v357, %v355
    %v466 = vpack.c.b16 %v360, %v358
    %v467 = vpack.c.b16 %v361, %v359
    %v468 = vpack.c.b16 %v364, %v362
    %v469 = vpack.c.b16 %v365, %v363
    %v470 = vpack.c.b16 %v368, %v366
    %v471 = vpack.c.b16 %v369, %v367
    %v472 = vpack.c.b16 %v372, %v370
    %v473 = vpack.c.b16 %v373, %v371
    %v474 = vpack.c.b16 %v376, %v374
    %v475 = vpack.c.b16 %v377, %v375
    %v476 = vpack.c.b16 %v380, %v378
    %v477 = vpack.c.b16 %v381, %v379
    %v478 = vpack.c.b16 %v384, %v382
    %v479 = vpack.c.b16 %v385, %v383
    %v480 = vpack.c.b16 %v388, %v386
    %v481 = vpack.c.b16 %v389, %v387
    %v482 = vpack.c.b16 %v392, %v390
    %v483 = vpack.c.b16 %v393, %v391
    %v484 = vpack.c.b16 %v396, %v394
    %v485 = vpack.c.b16 %v397, %v395
    %v486 = vpack.c.b16 %v400, %v398
    %v487 = vpack.c.b16 %v401, %v399
    %v488 = vpack.c.b16 %v404, %v402
    %v489 = vpack.c.b16 %v405, %v403
    %v490 = vpack.c.b16 %v408, %v406
    %v491 = vpack.c.b16 %v409, %v407
    %v492 = vpack.c.b16 %v412, %v410
    %v493 = vpack.c.b16 %v413, %v411
    %v494 = vpack.c.b16 %v416, %v414
    %v495 = vpack.c.b16 %v417, %v415
    %v496 = vpack.c.b16 %v420, %v418
    %v497 = vpack.c.b16 %v421, %v419
    %v498 = vpack.c.b16 %v424, %v422
    %v499 = vpack.c.b16 %v425, %v423
    %v500 = vpack.c.b16 %v428, %v426
    %v501 = vpack.c.b16 %v429, %v427
    %v502 = vpack.c.b16 %v432, %v430
    %v503 = vpack.c.b16 %v433, %v431
    %v504 = vpack.c.b16 %v436, %v434
    %v505 = vpack.c.b16 %v437, %v435
    %v506 = vpack.c.b16 %v440, %v438
    %v507 = vpack.c.b16 %v441, %v439
    %v508 = vpack.c.b16 %v444, %v442
    %v509 = vpack.c.b16 %v445, %v443
    %574 = vmatprep.subr.bf16.mxu0 %v461
    %575 = vmatpush1.bf16.msra.mxu0 %v460
    %576 = vmatprep.subr.bf16.mxu0 %v459
    %577 = vmatpush1.bf16.msra.mxu0 %v458
    %578 = vmatprep.subr.bf16.mxu0 %v457
    %579 = vmatpush1.bf16.msra.mxu0 %v456
    %580 = vmatprep.subr.bf16.mxu0 %v455
    %581 = vmatpush1.bf16.msra.mxu0 %v454
    %582 = vmatprep.subr.bf16.mxu0 %v453
    %583 = vmatpush1.bf16.msra.mxu0 %v452
    %584 = vmatprep.subr.bf16.mxu0 %v451
    %585 = vmatpush1.bf16.msra.mxu0 %v450
    %586 = vmatprep.subr.bf16.mxu0 %v449
    %587 = vmatpush1.bf16.msra.mxu0 %v448
    %588 = vmatprep.subr.bf16.mxu0 %v447
    %589 = vmatpush1.bf16.msra.mxu0 %v446
    %590 = vmatprep.subr.bf16.mxu0 %v477
    %591 = vmatpush2.bf16.msra.mxu0 %v476
    %592 = vmatprep.subr.bf16.mxu0 %v475
    %593 = vmatpush2.bf16.msra.mxu0 %v474
    %594 = vmatprep.subr.bf16.mxu0 %v473
    %595 = vmatpush2.bf16.msra.mxu0 %v472
    %596 = vmatprep.subr.bf16.mxu0 %v471
    %597 = vmatpush2.bf16.msra.mxu0 %v470
    %598 = vmatprep.subr.bf16.mxu0 %v469
    %599 = vmatpush2.bf16.msra.mxu0 %v468
    %600 = vmatprep.subr.bf16.mxu0 %v467
    %601 = vmatpush2.bf16.msra.mxu0 %v466
    %602 = vmatprep.subr.bf16.mxu0 %v465
    %603 = vmatpush2.bf16.msra.mxu0 %v464
    %604 = vmatprep.subr.bf16.mxu0 %v463
    %605 = vmatpush2.bf16.msra.mxu0 %v462
    %606 = vmatprep.mubr.bf16.mxu0 %v175
    %607 = vmatmul.mubr.bf16.gmra.mxu0 %v174
    %v608 = vpop.f32.mrf.mxu0
    %v609 = vadd.f32 %v247, %v608
    %v610 = vpop.f32.mrf.mxu0
    %v611 = vadd.f32 %v251, %v610
    %v612 = vpop.f32.mrf.mxu0
    %v613 = vpop.f32.mrf.mxu0
    %614 = vdwg.mxu0
    %615 = vmatprep.subr.bf16.mxu0 %v493
    %616 = vmatpush1.bf16.msra.mxu0 %v492
    %617 = vmatprep.subr.bf16.mxu0 %v491
    %618 = vmatpush1.bf16.msra.mxu0 %v490
    %619 = vmatprep.subr.bf16.mxu0 %v489
    %620 = vmatpush1.bf16.msra.mxu0 %v488
    %621 = vmatprep.subr.bf16.mxu0 %v487
    %622 = vmatpush1.bf16.msra.mxu0 %v486
    %623 = vmatprep.subr.bf16.mxu0 %v485
    %624 = vmatpush1.bf16.msra.mxu0 %v484
    %625 = vmatprep.subr.bf16.mxu0 %v483
    %626 = vmatpush1.bf16.msra.mxu0 %v482
    %627 = vmatprep.subr.bf16.mxu0 %v481
    %628 = vmatpush1.bf16.msra.mxu0 %v480
    %629 = vmatprep.subr.bf16.mxu0 %v479
    %630 = vmatpush1.bf16.msra.mxu0 %v478
    %631 = vmatprep.subr.bf16.mxu0 %v509
    %632 = vmatpush2.bf16.msra.mxu0 %v508
    %633 = vmatprep.subr.bf16.mxu0 %v507
    %634 = vmatpush2.bf16.msra.mxu0 %v506
    %635 = vmatprep.subr.bf16.mxu0 %v505
    %636 = vmatpush2.bf16.msra.mxu0 %v504
    %637 = vmatprep.subr.bf16.mxu0 %v503
    %638 = vmatpush2.bf16.msra.mxu0 %v502
    %639 = vmatprep.subr.bf16.mxu0 %v501
    %640 = vmatpush2.bf16.msra.mxu0 %v500
    %641 = vmatprep.subr.bf16.mxu0 %v499
    %642 = vmatpush2.bf16.msra.mxu0 %v498
    %643 = vmatprep.subr.bf16.mxu0 %v497
    %644 = vmatpush2.bf16.msra.mxu0 %v496
    %645 = vmatprep.subr.bf16.mxu0 %v495
    %646 = vmatpush2.bf16.msra.mxu0 %v494
    %647 = vmatprep.mubr.bf16.mxu0 %v177
    %648 = vmatmul.mubr.bf16.gmra.mxu0 %v176
    %v649 = vpop.f32.mrf.mxu0
    %v650 = vadd.f32 %v609, %v649
    %v651 = vpop.f32.mrf.mxu0
    %v652 = vadd.f32 %v611, %v651
    %v653 = vpop.f32.mrf.mxu0
    %v654 = vpop.f32.mrf.mxu0
    %655 = vdwg.mxu0
    %v656 = vxor.u32 %v650, 2147483648
    %v657 = vxor.u32 %v652, 2147483648
    %v658 = vmul.f32 %v656, 1.442695
    %v659 = vpow.pop %v658
    %v660 = vmul.f32 %v657, 1.442695
    %v661 = vpow.pop %v660
    %v662 = vadd.f32 %v659, 1.0
    %v663 = vadd.f32 %v661, 1.0
    %v664 = vrcp.pop %v662
    %v665 = vmul.f32 1.0, %v664
    %v666 = vrcp.pop %v663
    %v667 = vmul.f32 1.0, %v666
    %v670 = vcombine.low %v665, %v667
    %v672 = vunpack.c.l.s4 1966171168
    %v673 = vunpack.c.0.s8 %v672
    %v674 = vlaneseq
    %v675 = vshrl.u32 %v674, 7
    %v676 = vsub.s32 %v673, %v675
    %v677 = vrot.slane %v670, %v676
    %v678 = vcombine.high %v677, %v677
    %v680 = vunpack.c.l.s4 1966171168
    %v681 = vunpack.c.0.s8 %v680
    %v682 = vlaneseq
    %v683 = vshrl.u32 %v682, 7
    %v684 = vsub.s32 %v681, %v683
    %v685 = vrot.slane %v677, %v684
    %v687 = vunpack.c.l.s4 1966171168
    %v688 = vunpack.c.0.s8 %v687
    %v689 = vlaneseq
    %v690 = vshrl.u32 %v689, 7
    %v691 = vsub.s32 %v688, %v690
    %v692 = vrot.slane %v678, %v691
    %v693 = vlaneseq
    %v694 = vshrl.u32 %v693, 7
    %v695 = vsub.s32 0, %v694
    %v696 = vrot.slane %v685, %v695
    %v697 = vlaneseq
    %v698 = vshrl.u32 %v697, 7
    %v699 = vsub.s32 1, %v698
    %v700 = vrot.slane %v685, %v699
    %v701 = vlaneseq
    %v702 = vshrl.u32 %v701, 7
    %v703 = vsub.s32 0, %v702
    %v704 = vrot.slane %v692, %v703
    %v705 = vlaneseq
    %v706 = vshrl.u32 %v705, 7
    %v707 = vsub.s32 1, %v706
    %v708 = vrot.slane %v692, %v707
    %v713 = vmul.f32 %v21, %v696
    %v714 = vmul.f32 %v22, %v700
    %v715 = vmul.f32 %v23, %v696
    %v716 = vmul.f32 %v24, %v700
    %v717 = vmul.f32 %v25, %v696
    %v718 = vmul.f32 %v26, %v700
    %v719 = vmul.f32 %v27, %v696
    %v720 = vmul.f32 %v28, %v700
    %v721 = vmul.f32 %v29, %v696
    %v722 = vmul.f32 %v30, %v700
    %v723 = vmul.f32 %v31, %v696
    %v724 = vmul.f32 %v32, %v700
    %v725 = vmul.f32 %v33, %v696
    %v726 = vmul.f32 %v34, %v700
    %v727 = vmul.f32 %v35, %v696
    %v728 = vmul.f32 %v36, %v700
    %v729 = vmul.f32 %v37, %v704
    %v730 = vmul.f32 %v38, %v708
    %v731 = vmul.f32 %v39, %v704
    %v732 = vmul.f32 %v40, %v708
    %v733 = vmul.f32 %v41, %v704
    %v734 = vmul.f32 %v42, %v708
    %v735 = vmul.f32 %v43, %v704
    %v736 = vmul.f32 %v44, %v708
    %v737 = vmul.f32 %v45, %v704
    %v738 = vmul.f32 %v46, %v708
    %v739 = vmul.f32 %v47, %v704
    %v740 = vmul.f32 %v48, %v708
    %v741 = vmul.f32 %v49, %v704
    %v742 = vmul.f32 %v50, %v708
    %v743 = vmul.f32 %v51, %v704
    %v744 = vmul.f32 %v52, %v708
    %v745 = vadd.f32 %v713, %v714
    %746 = vadd.xlane.f32.xlu0 %v745
    %v747 = vpop.xlane.xlu0 %746
    %v748 = vadd.f32 %v715, %v716
    %749 = vadd.xlane.f32.xlu0 %v748
    %v750 = vpop.xlane.xlu0 %749
    %v751 = vadd.f32 %v717, %v718
    %752 = vadd.xlane.f32.xlu0 %v751
    %v753 = vpop.xlane.xlu0 %752
    %v754 = vadd.f32 %v719, %v720
    %755 = vadd.xlane.f32.xlu0 %v754
    %v756 = vpop.xlane.xlu0 %755
    %v757 = vadd.f32 %v721, %v722
    %758 = vadd.xlane.f32.xlu0 %v757
    %v759 = vpop.xlane.xlu0 %758
    %v760 = vadd.f32 %v723, %v724
    %761 = vadd.xlane.f32.xlu0 %v760
    %v762 = vpop.xlane.xlu0 %761
    %v763 = vadd.f32 %v725, %v726
    %764 = vadd.xlane.f32.xlu0 %v763
    %v765 = vpop.xlane.xlu0 %764
    %v766 = vadd.f32 %v727, %v728
    %767 = vadd.xlane.f32.xlu0 %v766
    %v768 = vpop.xlane.xlu0 %767
    %v769 = vadd.f32 %v729, %v730
    %770 = vadd.xlane.f32.xlu0 %v769
    %v771 = vpop.xlane.xlu0 %770
    %v772 = vadd.f32 %v731, %v732
    %773 = vadd.xlane.f32.xlu0 %v772
    %v774 = vpop.xlane.xlu0 %773
    %v775 = vadd.f32 %v733, %v734
    %776 = vadd.xlane.f32.xlu0 %v775
    %v777 = vpop.xlane.xlu0 %776
    %v778 = vadd.f32 %v735, %v736
    %779 = vadd.xlane.f32.xlu0 %v778
    %v780 = vpop.xlane.xlu0 %779
    %v781 = vadd.f32 %v737, %v738
    %782 = vadd.xlane.f32.xlu0 %v781
    %v783 = vpop.xlane.xlu0 %782
    %v784 = vadd.f32 %v739, %v740
    %785 = vadd.xlane.f32.xlu0 %v784
    %v786 = vpop.xlane.xlu0 %785
    %v787 = vadd.f32 %v741, %v742
    %788 = vadd.xlane.f32.xlu0 %v787
    %v789 = vpop.xlane.xlu0 %788
    %v790 = vadd.f32 %v743, %v744
    %791 = vadd.xlane.f32.xlu0 %v790
    %v792 = vpop.xlane.xlu0 %791
    %v793 = vld [vmem:[%s3] sm:$0xff]
    %v794 = vld [vmem:[%s3 + $0x8] sm:$0xff]
    %v795 = vld [vmem:[%s3 + $0x10] sm:$0xff]
    %v796 = vld [vmem:[%s3 + $0x18] sm:$0xff]
    %v797 = vld [vmem:[%s3 + $0x20] sm:$0xff]
    %v798 = vld [vmem:[%s3 + $0x28] sm:$0xff]
    %v799 = vld [vmem:[%s3 + $0x30] sm:$0xff]
    %v800 = vld [vmem:[%s3 + $0x38] sm:$0xff]
    %v801 = vld [vmem:[%s4] sm:$0x1]
    %v803 = vlaneseq
    %v804 = vshrl.u32 %v803, 7
    %v805 = vsub.s32 0, %v804
    %v806 = vrot.slane %v801, %v805
    %v824 = vlaneseq
    %v825 = vand.u32 %v824, 127
    %v826 = vlaneseq
    %v827 = vshrl.u32 %v826, 7
    %v828 = vsub.s32 %v825, %v827
    %v829 = vrot.slane %v747, %v828
    %v830 = vadd.s32 %v825, 4294967288
    %v831 = vlaneseq
    %v832 = vshrl.u32 %v831, 7
    %v833 = vsub.s32 %v830, %v832
    %v834 = vrot.slane %v750, %v833
    %vm835 = vcmask 130112
    %v836 = vsel %vm835, %v834, %v829
    %v837 = vadd.s32 %v825, 4294967280
    %v838 = vlaneseq
    %v839 = vshrl.u32 %v838, 7
    %v840 = vsub.s32 %v837, %v839
    %v841 = vrot.slane %v753, %v840
    %vm842 = vcmask 195712
    %v843 = vsel %vm842, %v841, %v836
    %v844 = vadd.s32 %v825, 4294967272
    %v845 = vlaneseq
    %v846 = vshrl.u32 %v845, 7
    %v847 = vsub.s32 %v844, %v846
    %v848 = vrot.slane %v756, %v847
    %vm849 = vcmask 261312
    %v850 = vsel %vm849, %v848, %v843
    %v851 = vadd.s32 %v825, 4294967264
    %v852 = vlaneseq
    %v853 = vshrl.u32 %v852, 7
    %v854 = vsub.s32 %v851, %v853
    %v855 = vrot.slane %v759, %v854
    %vm856 = vcmask 326912
    %v857 = vsel %vm856, %v855, %v850
    %v858 = vadd.s32 %v825, 4294967256
    %v859 = vlaneseq
    %v860 = vshrl.u32 %v859, 7
    %v861 = vsub.s32 %v858, %v860
    %v862 = vrot.slane %v762, %v861
    %vm863 = vcmask 392512
    %v864 = vsel %vm863, %v862, %v857
    %v865 = vadd.s32 %v825, 4294967248
    %v866 = vlaneseq
    %v867 = vshrl.u32 %v866, 7
    %v868 = vsub.s32 %v865, %v867
    %v869 = vrot.slane %v765, %v868
    %vm870 = vcmask 458112
    %v871 = vsel %vm870, %v869, %v864
    %v872 = vadd.s32 %v825, 4294967240
    %v873 = vlaneseq
    %v874 = vshrl.u32 %v873, 7
    %v875 = vsub.s32 %v872, %v874
    %v876 = vrot.slane %v768, %v875
    %vm877 = vcmask 523712
    %v878 = vsel %vm877, %v876, %v871
    %v879 = vlaneseq
    %v880 = vshrl.u32 %v879, 7
    %v881 = vsub.s32 %v825, %v880
    %v882 = vrot.slane %v771, %v881
    %v883 = vlaneseq
    %v884 = vshrl.u32 %v883, 7
    %v885 = vsub.s32 %v830, %v884
    %v886 = vrot.slane %v774, %v885
    %v887 = vsel %vm835, %v886, %v882
    %v888 = vlaneseq
    %v889 = vshrl.u32 %v888, 7
    %v890 = vsub.s32 %v837, %v889
    %v891 = vrot.slane %v777, %v890
    %v892 = vsel %vm842, %v891, %v887
    %v893 = vlaneseq
    %v894 = vshrl.u32 %v893, 7
    %v895 = vsub.s32 %v844, %v894
    %v896 = vrot.slane %v780, %v895
    %v897 = vsel %vm849, %v896, %v892
    %v898 = vlaneseq
    %v899 = vshrl.u32 %v898, 7
    %v900 = vsub.s32 %v851, %v899
    %v901 = vrot.slane %v783, %v900
    %v902 = vsel %vm856, %v901, %v897
    %v903 = vlaneseq
    %v904 = vshrl.u32 %v903, 7
    %v905 = vsub.s32 %v858, %v904
    %v906 = vrot.slane %v786, %v905
    %v907 = vsel %vm863, %v906, %v902
    %v908 = vlaneseq
    %v909 = vshrl.u32 %v908, 7
    %v910 = vsub.s32 %v865, %v909
    %v911 = vrot.slane %v789, %v910
    %v912 = vsel %vm870, %v911, %v907
    %v913 = vlaneseq
    %v914 = vshrl.u32 %v913, 7
    %v915 = vsub.s32 %v872, %v914
    %v916 = vrot.slane %v792, %v915
    %v917 = vsel %vm877, %v916, %v912
    %v918 = vsel %vm161, %v917, %v878
    %vm919 = vcmask 523264
    %v920 = vsel %vm919, %v918, 0
    %922 = vmatprep.subr.mxu0 0.0
    %923 = vmatpush1.msra.mxu0 0.0
    %924 = vmatprep.subr.mxu0 0.0
    %925 = vmatpush1.msra.mxu0 0.0
    %926 = vmatprep.subr.mxu0 0.0
    %927 = vmatpush1.msra.mxu0 0.0
    %928 = vmatprep.subr.mxu0 0.0
    %929 = vmatpush1.msra.mxu0 0.0
    %930 = vmatprep.subr.mxu0 0.0
    %931 = vmatpush1.msra.mxu0 0.0
    %932 = vmatprep.subr.mxu0 0.0
    %933 = vmatpush1.msra.mxu0 0.0
    %934 = vmatprep.subr.mxu0 0.0
    %935 = vmatpush1.msra.mxu0 0.0
    %936 = vmatprep.subr.mxu0 0.0
    %937 = vmatpush1.msra.mxu0 0.0
    %938 = vmatprep.subr.mxu0 0.0
    %939 = vmatpush1.msra.mxu0 %v800
    %940 = vmatprep.subr.mxu0 0.0
    %941 = vmatpush1.msra.mxu0 %v799
    %942 = vmatprep.subr.mxu0 0.0
    %943 = vmatpush1.msra.mxu0 %v798
    %944 = vmatprep.subr.mxu0 0.0
    %945 = vmatpush1.msra.mxu0 %v797
    %946 = vmatprep.subr.mxu0 0.0
    %947 = vmatpush1.msra.mxu0 %v796
    %948 = vmatprep.subr.mxu0 0.0
    %949 = vmatpush1.msra.mxu0 %v795
    %950 = vmatprep.subr.mxu0 0.0
    %951 = vmatpush1.msra.mxu0 %v794
    %952 = vmatprep.subr.mxu0 0.0
    %953 = vmatpush1.msra.mxu0 %v793
    %954 = vmatprep.subr.mxu0 0.0
    %955 = vmatpush2.msra.mxu0 0.0
    %956 = vmatprep.subr.mxu0 0.0
    %957 = vmatpush2.msra.mxu0 0.0
    %958 = vmatprep.subr.mxu0 0.0
    %959 = vmatpush2.msra.mxu0 0.0
    %960 = vmatprep.subr.mxu0 0.0
    %961 = vmatpush2.msra.mxu0 0.0
    %962 = vmatprep.subr.mxu0 0.0
    %963 = vmatpush2.msra.mxu0 0.0
    %964 = vmatprep.subr.mxu0 0.0
    %965 = vmatpush2.msra.mxu0 0.0
    %966 = vmatprep.subr.mxu0 0.0
    %967 = vmatpush2.msra.mxu0 0.0
    %968 = vmatprep.subr.mxu0 0.0
    %969 = vmatpush2.msra.mxu0 0.0
    %970 = vmatprep.subr.mxu0 0.0
    %971 = vmatpush2.msra.mxu0 0.0
    %972 = vmatprep.subr.mxu0 0.0
    %973 = vmatpush2.msra.mxu0 0.0
    %974 = vmatprep.subr.mxu0 0.0
    %975 = vmatpush2.msra.mxu0 0.0
    %976 = vmatprep.subr.mxu0 0.0
    %977 = vmatpush2.msra.mxu0 0.0
    %978 = vmatprep.subr.mxu0 0.0
    %979 = vmatpush2.msra.mxu0 0.0
    %980 = vmatprep.subr.mxu0 0.0
    %981 = vmatpush2.msra.mxu0 0.0
    %982 = vmatprep.subr.mxu0 0.0
    %983 = vmatpush2.msra.mxu0 0.0
    %984 = vmatprep.subr.mxu0 0.0
    %985 = vmatpush2.msra.mxu0 0.0
    %986 = vmatprep.mubr.f32.mxu0 0.0
    %987 = vmatmul.mubr.f32.gmra.mxu0 %v920
    %v988 = vpop.f32.mrf.mxu0
    %v989 = vadd.f32 %v806, %v988
    %v990 = vpop.f32.mrf.mxu0
    %991 = vdwg.mxu0
    %v992 = vxor.u32 %v989, 2147483648
    %v993 = vmul.f32 %v992, 1.442695
    %v994 = vpow.pop %v993
    %v995 = vadd.f32 %v994, 1.0
    %v996 = vrcp.pop %v995
    %v997 = vmul.f32 1.0, %v996
    %998 = vst [vmem:[#allocation2] sm:$0x3] %v997
    // Predicated region
    $region22: #{classification_forward.1} parent=1 // pred_check
      _
    $region23: #{classification_forward.1} parent=1 // pred_check_branch
      %1000 = sbr.rel (0) target = $region25
    $region24: #{classification_forward.1} parent=1 // pred_region
      %s1002 = ssub.s32 32, 32
      %1003 = vsyncadd [#allocation3], %s1002
      %s1005 = sshll.u32 [#allocation2], 4
      %s1006 = int_to_ptr.vmem [resolvable:$true] %s1005
      %1008 = dma.vmem_to_hbm [thread:$0]  %s1006, 32, %s5, [#allocation3]
    $region25: #{classification_forward.1} parent=1 // pred_fallthru
      _
    // Predicated region
    $region26: #{classification_forward.1} parent=1 // pred_check
      _
    $region27: #{classification_forward.1} parent=1 // pred_check_branch
      %1010 = sbr.rel (0) target = $region29
    $region28: #{classification_forward.1} parent=1 // pred_region
      %1011 = dma.done [#allocation3], 32
    $region29: #{classification_forward.1} parent=1 // pred_fallthru
      _
    %1012 = vsyncpa [#allocation3], 1

</llo_original>
